<compile_context>
chip_gen: v7x
topology: tpu7x:2x2x1
jax: 0.10.0
libtpu: 0.0.40
codegen_flags: <defaults>
</compile_context>

<pallas_src>
import functools

import jax
import jax.numpy as jnp
from jax.experimental import pallas as pl
from jax.experimental.pallas import tpu as pltpu

INPUT_SIZE = 2
H1 = 64
H2 = 256
N_CLASS = 1000
N_NOISE = 128
N_CLASS_PAD = 1024                  # class head padded to lane-aligned width
N_OUT = N_CLASS_PAD + N_NOISE       # 1152 = 9 * 128, lane-dense fused output


def _mlp_kernel(x_ref, w1_ref, b1_ref, w2_ref, b2_ref, w3_ref, b3_ref, out_ref):
    x = x_ref[...]                                          # [TB, 2] f32

    # fc1 (contraction dim = 2): VPU multiply-adds, skip the MXU entirely.
    w1 = w1_ref[...]                                        # [2, 64] f32
    h1 = x[:, 0:1] * w1[0:1, :] + x[:, 1:2] * w1[1:2, :] + b1_ref[...]
    h1 = jnp.maximum(h1, 0.0)                               # [TB, 64] f32

    # fc2: bf16 operands on the MXU, f32 accumulation; bias/ReLU in f32 (VPU).
    h2 = jnp.dot(h1.astype(jnp.bfloat16), w2_ref[...],
                 preferred_element_type=jnp.float32)
    h2 = jnp.maximum(h2 + b2_ref[...], 0.0)                 # [TB, 256] f32

    # Fused class+noise heads: one [256, 1152] matmul, one lane-dense store.
    y = jnp.dot(h2.astype(jnp.bfloat16), w3_ref[...],
                preferred_element_type=jnp.float32)
    out_ref[...] = (y + b3_ref[...]).astype(out_ref.dtype)  # [TB, 1152]


def _round_up(n, m):
    return (n + m - 1) // m * m


def init_params(key):
    """PyTorch-style Linear init: U(-1/sqrt(fan_in), +1/sqrt(fan_in)).
    Weights stored [in, out] (transpose of PyTorch's [out, in])."""
    def linear(k, fan_in, fan_out):
        kw, kb = jax.random.split(k)
        bound = 1.0 / jnp.sqrt(fan_in)
        w = jax.random.uniform(kw, (fan_in, fan_out), jnp.float32, -bound, bound)
        b = jax.random.uniform(kb, (1, fan_out), jnp.float32, -bound, bound)
        return w, b

    k1, k2, k3, k4 = jax.random.split(key, 4)
    w1, b1 = linear(k1, INPUT_SIZE, H1)
    w2, b2 = linear(k2, H1, H2)
    w3c, b3c = linear(k3, H2, N_CLASS)
    w3n, b3n = linear(k4, H2, N_NOISE)
    return (w1, b1, w2, b2, w3c, b3c, w3n, b3n)


def prepare_params(params):
    """Fuse/pad the two heads and cast matmul weights to bf16 for the kernel."""
    w1, b1, w2, b2, w3c, b3c, w3n, b3n = params
    w3c_p = jnp.pad(w3c, ((0, 0), (0, N_CLASS_PAD - N_CLASS)))
    b3c_p = jnp.pad(b3c, ((0, 0), (0, N_CLASS_PAD - N_CLASS)))
    w3 = jnp.concatenate([w3c_p, w3n], axis=1)              # [256, 1152]
    b3 = jnp.concatenate([b3c_p, b3n], axis=1)              # [1, 1152]
    return (
        w1.astype(jnp.float32),        # tiny; consumed on the VPU
        b1.astype(jnp.float32),
        w2.astype(jnp.bfloat16),       # MXU operand
        b2.astype(jnp.float32),
        w3.astype(jnp.bfloat16),       # MXU operand (dominant HBM bytes)
        b3.astype(jnp.float32),
    )


def neural_translator_forward(x, prepared_params):
    """x: [B, INPUT_SIZE] f32. Returns (selected_class [B,1000],
    selected_noise [B,128]) in f32."""
    w1, b1, w2, b2, w3, b3 = prepared_params
    B = x.shape[0]

    # Batch tile: sublane-aligned, capped so per-step VMEM stays tiny.
    TB = min(_round_up(max(B, 1), 8), 256)
    B_pad = _round_up(B, TB)
    if B_pad != B:
        x = jnp.pad(x, ((0, B_pad - B), (0, 0)))
    grid = (B_pad // TB,)

    batch_map = lambda i: (i, 0)
    const_map = lambda i: (0, 0)      # weights stay resident across grid steps

    cost = pl.CostEstimate(
        flops=2 * B_pad * (INPUT_SIZE * H1 + H1 * H2 + H2 * N_OUT),
        transcendentals=0,
        bytes_accessed=(x.size * 4
                        + w1.size * 4 + b1.size * 4
                        + w2.size * 2 + b2.size * 4
                        + w3.size * 2 + b3.size * 4
                        + B_pad * N_OUT * 4),
    )

    out = pl.pallas_call(
        _mlp_kernel,
        out_shape=jax.ShapeDtypeStruct((B_pad, N_OUT), jnp.float32),
        grid=grid,
        in_specs=[
            pl.BlockSpec((TB, INPUT_SIZE), batch_map),
            pl.BlockSpec(w1.shape, const_map),
            pl.BlockSpec(b1.shape, const_map),
            pl.BlockSpec(w2.shape, const_map),
            pl.BlockSpec(b2.shape, const_map),
            pl.BlockSpec(w3.shape, const_map),
            pl.BlockSpec(b3.shape, const_map),
        ],
        out_specs=pl.BlockSpec((TB, N_OUT), batch_map),
        compiler_params=pltpu.CompilerParams(
            dimension_semantics=("parallel",)),
        cost_estimate=cost,
    )(x, w1, b1, w2, b2, w3, b3)

    selected_class = out[:B, :N_CLASS]
    selected_noise = out[:B, N_CLASS_PAD:N_CLASS_PAD + N_NOISE]
    return selected_class, selected_noise


def _reference_forward(x, params):
    """Pure-JAX f32 reference matching the PyTorch module."""
    w1, b1, w2, b2, w3c, b3c, w3n, b3n = params
    h1 = jnp.maximum(x @ w1 + b1, 0.0)
    h2 = jnp.maximum(h1 @ w2 + b2, 0.0)
    return h2 @ w3c + b3c, h2 @ w3n + b3n


if __name__ == "__main__":
    key = jax.random.PRNGKey(0)
    k_params, k_x = jax.random.split(key)

    B = 8
    params_f32 = init_params(k_params)
    params_kernel = prepare_params(params_f32)
    x = jax.random.normal(k_x, (B, INPUT_SIZE), jnp.float32)

    fwd = jax.jit(neural_translator_forward)
    cls_out, noise_out = fwd(x, params_kernel)
    jax.block_until_ready((cls_out, noise_out))

    # sanity-check against pure-JAX f32 reference (bf16 weights -> loose tol)
    ref_cls, ref_noise = _reference_forward(x, params_f32)
    assert cls_out.shape == (B, N_CLASS) and noise_out.shape == (B, N_NOISE)
    assert jnp.allclose(cls_out, ref_cls, atol=5e-2, rtol=5e-2)
    assert jnp.allclose(noise_out, ref_noise, atol=5e-2, rtol=5e-2)

    print("KERNEL_OK")
</pallas_src>

<mosaic_0001>
module attributes {stable_mosaic.version = 11 : i64} {
  func.func @_mlp_kernel(%arg0: i32, %arg1: memref<8x2xf32, #tpu.memory_space<vmem>>, %arg2: memref<2x64xf32, #tpu.memory_space<vmem>>, %arg3: memref<1x64xf32, #tpu.memory_space<vmem>>, %arg4: memref<64x256xbf16, #tpu.memory_space<vmem>>, %arg5: memref<1x256xf32, #tpu.memory_space<vmem>>, %arg6: memref<256x1152xbf16, #tpu.memory_space<vmem>>, %arg7: memref<1x1152xf32, #tpu.memory_space<vmem>>, %arg8: memref<8x1152xf32, #tpu.memory_space<vmem>>) attributes {dimension_semantics = [#tpu.dimension_semantics<parallel>], iteration_bounds = array<i64: 1>, scalar_prefetch = 0 : i64, scratch_operands = 0 : i64, tpu.core_type = #tpu.core_type<tc>, window_params = [{transform_indices = @transform_0, window_bounds = array<i64: 8, 2>}, {pipeline_mode = #tpu.pipeline_mode<synchronous>, transform_indices = @transform_1, window_bounds = array<i64: 2, 64>}, {pipeline_mode = #tpu.pipeline_mode<synchronous>, transform_indices = @transform_2, window_bounds = array<i64: 1, 64>}, {pipeline_mode = #tpu.pipeline_mode<synchronous>, transform_indices = @transform_3, window_bounds = array<i64: 64, 256>}, {pipeline_mode = #tpu.pipeline_mode<synchronous>, transform_indices = @transform_4, window_bounds = array<i64: 1, 256>}, {pipeline_mode = #tpu.pipeline_mode<synchronous>, transform_indices = @transform_5, window_bounds = array<i64: 256, 1152>}, {pipeline_mode = #tpu.pipeline_mode<synchronous>, transform_indices = @transform_6, window_bounds = array<i64: 1, 1152>}, {transform_indices = @transform_7, window_bounds = array<i64: 8, 1152>}]} {
    %c0 = arith.constant 0 : index
    %c0_0 = arith.constant 0 : index
    %0 = vector.load %arg1[%c0, %c0_0] : memref<8x2xf32, #tpu.memory_space<vmem>>, vector<8x2xf32>
    %c0_1 = arith.constant 0 : index
    %c0_2 = arith.constant 0 : index
    %1 = vector.load %arg2[%c0_1, %c0_2] : memref<2x64xf32, #tpu.memory_space<vmem>>, vector<2x64xf32>
    %2 = vector.extract_strided_slice %0 {offsets = [0, 0], sizes = [8, 1], strides = [1, 1]} : vector<8x2xf32> to vector<8x1xf32>
    %3 = vector.extract_strided_slice %1 {offsets = [0, 0], sizes = [1, 64], strides = [1, 1]} : vector<2x64xf32> to vector<1x64xf32>
    %4 = vector.broadcast %2 : vector<8x1xf32> to vector<8x64xf32>
    %5 = vector.broadcast %3 : vector<1x64xf32> to vector<8x64xf32>
    %6 = arith.mulf %4, %5 : vector<8x64xf32>
    %7 = vector.extract_strided_slice %0 {offsets = [0, 1], sizes = [8, 1], strides = [1, 1]} : vector<8x2xf32> to vector<8x1xf32>
    %8 = vector.extract_strided_slice %1 {offsets = [1, 0], sizes = [1, 64], strides = [1, 1]} : vector<2x64xf32> to vector<1x64xf32>
    %9 = vector.broadcast %7 : vector<8x1xf32> to vector<8x64xf32>
    %10 = vector.broadcast %8 : vector<1x64xf32> to vector<8x64xf32>
    %11 = arith.mulf %9, %10 : vector<8x64xf32>
    %12 = arith.addf %6, %11 : vector<8x64xf32>
    %c0_3 = arith.constant 0 : index
    %c0_4 = arith.constant 0 : index
    %13 = vector.load %arg3[%c0_3, %c0_4] : memref<1x64xf32, #tpu.memory_space<vmem>>, vector<1x64xf32>
    %14 = vector.broadcast %13 : vector<1x64xf32> to vector<8x64xf32>
    %15 = arith.addf %12, %14 : vector<8x64xf32>
    %cst = arith.constant 0.000000e+00 : f32
    %16 = vector.broadcast %cst : f32 to vector<8x64xf32>
    %17 = arith.maximumf %15, %16 : vector<8x64xf32>
    %18 = arith.truncf %17 : vector<8x64xf32> to vector<8x64xbf16>
    %c0_5 = arith.constant 0 : index
    %c0_6 = arith.constant 0 : index
    %19 = vector.load %arg4[%c0_5, %c0_6] : memref<64x256xbf16, #tpu.memory_space<vmem>>, vector<64x256xbf16>
    %cst_7 = arith.constant dense<0.000000e+00> : vector<8x256xf32>
    %20 = tpu.matmul %18, %19, %cst_7 {dimension_numbers = #tpu.dot_dimension_numbers<[1], [0], [0], [1], [0, 0, 1, 1], [], []>} : vector<8x64xbf16>, vector<64x256xbf16>, vector<8x256xf32> -> vector<8x256xf32>
    %c0_8 = arith.constant 0 : index
    %c0_9 = arith.constant 0 : index
    %21 = vector.load %arg5[%c0_8, %c0_9] : memref<1x256xf32, #tpu.memory_space<vmem>>, vector<1x256xf32>
    %22 = vector.broadcast %21 : vector<1x256xf32> to vector<8x256xf32>
    %23 = arith.addf %20, %22 : vector<8x256xf32>
    %cst_10 = arith.constant 0.000000e+00 : f32
    %24 = vector.broadcast %cst_10 : f32 to vector<8x256xf32>
    %25 = arith.maximumf %23, %24 : vector<8x256xf32>
    %26 = arith.truncf %25 : vector<8x256xf32> to vector<8x256xbf16>
    %c0_11 = arith.constant 0 : index
    %c0_12 = arith.constant 0 : index
    %27 = vector.load %arg6[%c0_11, %c0_12] : memref<256x1152xbf16, #tpu.memory_space<vmem>>, vector<256x1152xbf16>
    %cst_13 = arith.constant dense<0.000000e+00> : vector<8x1152xf32>
    %28 = tpu.matmul %26, %27, %cst_13 {dimension_numbers = #tpu.dot_dimension_numbers<[1], [0], [0], [1], [0, 0, 1, 1], [], []>} : vector<8x256xbf16>, vector<256x1152xbf16>, vector<8x1152xf32> -> vector<8x1152xf32>
    %c0_14 = arith.constant 0 : index
    %c0_15 = arith.constant 0 : index
    %29 = vector.load %arg7[%c0_14, %c0_15] : memref<1x1152xf32, #tpu.memory_space<vmem>>, vector<1x1152xf32>
    %30 = vector.broadcast %29 : vector<1x1152xf32> to vector<8x1152xf32>
    %31 = arith.addf %28, %30 : vector<8x1152xf32>
    %c0_16 = arith.constant 0 : index
    %c0_17 = arith.constant 0 : index
    %32 = vector.load %arg8[%c0_16, %c0_17] : memref<8x1152xf32, #tpu.memory_space<vmem>>, vector<8x1152xf32>
    tpu.vector_store %arg8[%c0_16, %c0_17], %31 {strides = array<i32>} : memref<8x1152xf32, #tpu.memory_space<vmem>>, vector<8x1152xf32>,
    return
  }
  func.func @transform_0(%arg0: i32) -> (i32, i32) {
    %c0_i32 = arith.constant 0 : i32
    %c0_i32_0 = arith.constant 0 : i32
    return %arg0, %c0_i32 : i32, i32
  }
  func.func @transform_1(%arg0: i32) -> (i32, i32) {
    %c0_i32 = arith.constant 0 : i32
    %c0_i32_0 = arith.constant 0 : i32
    %c0_i32_1 = arith.constant 0 : i32
    return %c0_i32, %c0_i32_0 : i32, i32
  }
  func.func @transform_2(%arg0: i32) -> (i32, i32) {
    %c0_i32 = arith.constant 0 : i32
    %c0_i32_0 = arith.constant 0 : i32
    %c0_i32_1 = arith.constant 0 : i32
    return %c0_i32, %c0_i32_0 : i32, i32
  }
  func.func @transform_3(%arg0: i32) -> (i32, i32) {
    %c0_i32 = arith.constant 0 : i32
    %c0_i32_0 = arith.constant 0 : i32
    %c0_i32_1 = arith.constant 0 : i32
    return %c0_i32, %c0_i32_0 : i32, i32
  }
  func.func @transform_4(%arg0: i32) -> (i32, i32) {
    %c0_i32 = arith.constant 0 : i32
    %c0_i32_0 = arith.constant 0 : i32
    %c0_i32_1 = arith.constant 0 : i32
    return %c0_i32, %c0_i32_0 : i32, i32
  }
  func.func @transform_5(%arg0: i32) -> (i32, i32) {
    %c0_i32 = arith.constant 0 : i32
    %c0_i32_0 = arith.constant 0 : i32
    %c0_i32_1 = arith.constant 0 : i32
    return %c0_i32, %c0_i32_0 : i32, i32
  }
  func.func @transform_6(%arg0: i32) -> (i32, i32) {
    %c0_i32 = arith.constant 0 : i32
    %c0_i32_0 = arith.constant 0 : i32
    %c0_i32_1 = arith.constant 0 : i32
    return %c0_i32, %c0_i32_0 : i32, i32
  }
  func.func @transform_7(%arg0: i32) -> (i32, i32) {
    %c0_i32 = arith.constant 0 : i32
    %c0_i32_0 = arith.constant 0 : i32
    return %arg0, %c0_i32 : i32, i32
  }
}

</mosaic_0001>

<llo_original>
// kernel: neural_translator_forward.1
$region0: #{neural_translator_forward.1}
  #allocation0 [shape = 'u32[]', space=smem, size = 0x4, offset = 0x4, fixed_abs, tag = 'smem constant byte address 0x4 - core index']
  #allocation1 [shape = 'u32[144,128]{1,0:T(1,128)}', space=vmem, size = 0x12000, scoped, tag = 'internal scratch']
  %s0 = inlined_call_operand.vmem [shape: f32[8,2], index: 0, kind: input, shape index: {}]
  %s1 = inlined_call_operand.vmem [shape: f32[2,64], index: 1, kind: input, shape index: {}]
  %s2 = inlined_call_operand.vmem [shape: f32[1,64], index: 2, kind: input, shape index: {}]
  %s3 = inlined_call_operand.hbm [shape: bf16[64,256], index: 3, kind: input, shape index: {}]
  %s4 = inlined_call_operand.vmem [shape: f32[1,256], index: 4, kind: input, shape index: {}]
  %s5 = inlined_call_operand.hbm [shape: bf16[256,1152], index: 5, kind: input, shape index: {}]
  %s6 = inlined_call_operand.vmem [shape: f32[1,1152], index: 6, kind: input, shape index: {}]
  %s7 = inlined_call_operand.vmem [shape: f32[8,1152], index: 7, kind: output, shape index: {}]
  %s8 = sld [smem:[#allocation0]]
  $region46: #{neural_translator_forward.1} parent=0
    _
  %s10 = ssub.s32 1, %s8
  %s11 = scalar_select 0, %s10, %s8
  $region1: #{neural_translator_forward.1} parent=0
    #allocation2 [shape = 'u8[32768]{0}', space=vmem, size = 0x8000, scoped, tag = 'input window, operand 3, single buffered']
    #allocation3 [shape = 's32[1]{0}', space=sflag, size = 0x4, scoped, tag = 'scoped memory for neural_translator_forward.1']
    #allocation4 [shape = 'u8[589824]{0}', space=vmem, size = 0x90000, scoped, tag = 'input window, operand 5, single buffered']
    #allocation5 [shape = 's32[1]{0}', space=sflag, size = 0x4, scoped, tag = 'scoped memory for neural_translator_forward.1']
    %12 = vsyncpa [#allocation3], 0
    %13 = vsyncpa [#allocation5], 0
    // Predicated region
    $region2: #{neural_translator_forward.1} parent=1 // pred_check
      _
    $region3: #{neural_translator_forward.1} parent=1 // pred_check_branch
      %15 = sbr.rel (0) target = $region5
    $region4: #{neural_translator_forward.1} parent=1 // pred_region
      _
    $region5: #{neural_translator_forward.1} parent=1 // pred_fallthru
      _
    // Predicated region
    $region6: #{neural_translator_forward.1} parent=1 // pred_check
      _
    $region7: #{neural_translator_forward.1} parent=1 // pred_check_branch
      %17 = sbr.rel (0) target = $region9
    $region8: #{neural_translator_forward.1} parent=1 // pred_region
      _
    $region9: #{neural_translator_forward.1} parent=1 // pred_fallthru
      _
    // Predicated region
    $region10: #{neural_translator_forward.1} parent=1 // pred_check
      _
    $region11: #{neural_translator_forward.1} parent=1 // pred_check_branch
      %19 = sbr.rel (0) target = $region13
    $region12: #{neural_translator_forward.1} parent=1 // pred_region
      _
    $region13: #{neural_translator_forward.1} parent=1 // pred_fallthru
      _
    // Predicated region
    $region14: #{neural_translator_forward.1} parent=1 // pred_check
      _
    $region15: #{neural_translator_forward.1} parent=1 // pred_check_branch
      %21 = sbr.rel (0) target = $region17
    $region16: #{neural_translator_forward.1} parent=1 // pred_region
      %s23 = ssub.s32 1024, 1024
      %24 = vsyncadd [#allocation3], %s23
      %s25 = sshll.u32 [#allocation2], 4
      %s26 = int_to_ptr.vmem [resolvable:$true] %s25
      %31 = dma.hbm_to_vmem [thread:$0]  %s3, 1024, %s26, [#allocation3], 128, 128, 8
    $region17: #{neural_translator_forward.1} parent=1 // pred_fallthru
      _
    // Predicated region
    $region18: #{neural_translator_forward.1} parent=1 // pred_check
      _
    $region19: #{neural_translator_forward.1} parent=1 // pred_check_branch
      %33 = sbr.rel (0) target = $region21
    $region20: #{neural_translator_forward.1} parent=1 // pred_region
      _
    $region21: #{neural_translator_forward.1} parent=1 // pred_fallthru
      _
    // Predicated region
    $region22: #{neural_translator_forward.1} parent=1 // pred_check
      _
    $region23: #{neural_translator_forward.1} parent=1 // pred_check_branch
      %35 = sbr.rel (0) target = $region25
    $region24: #{neural_translator_forward.1} parent=1 // pred_region
      %s37 = ssub.s32 18432, 18432
      %38 = vsyncadd [#allocation5], %s37
      %s39 = sshll.u32 [#allocation4], 4
      %s40 = int_to_ptr.vmem [resolvable:$true] %s39
      %45 = dma.hbm_to_vmem [thread:$0]  %s5, 18432, %s40, [#allocation5], 576, 576, 36
    $region25: #{neural_translator_forward.1} parent=1 // pred_fallthru
      _
    // Predicated region
    $region26: #{neural_translator_forward.1} parent=1 // pred_check
      _
    $region27: #{neural_translator_forward.1} parent=1 // pred_check_branch
      %47 = sbr.rel (0) target = $region29
    $region28: #{neural_translator_forward.1} parent=1 // pred_region
      _
    $region29: #{neural_translator_forward.1} parent=1 // pred_fallthru
      _
    // Predicated region
    $region30: #{neural_translator_forward.1} parent=1 // pred_check
      _
    $region31: #{neural_translator_forward.1} parent=1 // pred_check_branch
      %49 = sbr.rel (0) target = $region33
    $region32: #{neural_translator_forward.1} parent=1 // pred_region
      %50 = dma.done [#allocation3], 1024
    $region33: #{neural_translator_forward.1} parent=1 // pred_fallthru
      _
    // Predicated region
    $region34: #{neural_translator_forward.1} parent=1 // pred_check
      _
    $region35: #{neural_translator_forward.1} parent=1 // pred_check_branch
      %52 = sbr.rel (0) target = $region37
    $region36: #{neural_translator_forward.1} parent=1 // pred_region
      %53 = dma.done [#allocation5], 18432
    $region37: #{neural_translator_forward.1} parent=1 // pred_fallthru
      _
    %v55 = vld [vmem:[%s0] sm:$0xff]
    %v56 = vld [vmem:[%s1] sm:$0x3]
    %58 = vset.pattern.permute.xlu0 0
    %59 = vperm.xlu0 %58, %v55
    %v60 = vpop.permute.xlu0 %59
    %v62 = vlaneseq
    %v63 = vshrl.u32 %v62, 7
    %v64 = vsub.s32 0, %v63
    %v65 = vrot.slane %v56, %v64
    %v66 = vmul.f32 %v60, %v65
    %67 = vset.pattern.permute.xlu0 1
    %68 = vperm.xlu0 %67, %v55
    %v69 = vpop.permute.xlu0 %68
    %v71 = vlaneseq
    %v72 = vshrl.u32 %v71, 7
    %v73 = vsub.s32 1, %v72
    %v74 = vrot.slane %v56, %v73
    %v75 = vmul.f32 %v69, %v74
    %v76 = vadd.f32 %v66, %v75
    %v77 = vld [vmem:[%s2] sm:$0x1]
    %v79 = vlaneseq
    %v80 = vshrl.u32 %v79, 7
    %v81 = vsub.s32 0, %v80
    %v82 = vrot.slane %v77, %v81
    %v84 = vadd.f32 %v76, %v82
    %v85 = vmax.f32 %v84, 0.0
    %v86 = vpack.c.bf16 %v85, %v85
    %v87 = vld [vmem:[#allocation2] sm:$0xff]
    %v88 = vld [vmem:[#allocation2 + $0x8] sm:$0xff]
    %v89 = vld [vmem:[#allocation2 + $0x10] sm:$0xff]
    %v90 = vld [vmem:[#allocation2 + $0x18] sm:$0xff]
    %v91 = vld [vmem:[#allocation2 + $0x20] sm:$0xff]
    %v92 = vld [vmem:[#allocation2 + $0x28] sm:$0xff]
    %v93 = vld [vmem:[#allocation2 + $0x30] sm:$0xff]
    %v94 = vld [vmem:[#allocation2 + $0x38] sm:$0xff]
    %v95 = vld [vmem:[%s4] sm:$0x3]
    %v97 = vlaneseq
    %v98 = vshrl.u32 %v97, 7
    %v99 = vsub.s32 0, %v98
    %v100 = vrot.slane %v95, %v99
    %v101 = vlaneseq
    %v102 = vshrl.u32 %v101, 7
    %v103 = vsub.s32 1, %v102
    %v104 = vrot.slane %v95, %v103
    %v115 = vunpack.c.l.b16 %v87
    %v116 = vunpack.c.h.b16 %v87
    %v117 = vunpack.c.l.b16 %v88
    %v118 = vunpack.c.h.b16 %v88
    %v119 = vunpack.c.l.b16 %v89
    %v120 = vunpack.c.h.b16 %v89
    %v121 = vunpack.c.l.b16 %v90
    %v122 = vunpack.c.h.b16 %v90
    %v123 = vunpack.c.l.b16 %v91
    %v124 = vunpack.c.h.b16 %v91
    %v125 = vunpack.c.l.b16 %v92
    %v126 = vunpack.c.h.b16 %v92
    %v127 = vunpack.c.l.b16 %v93
    %v128 = vunpack.c.h.b16 %v93
    %v129 = vunpack.c.l.b16 %v94
    %v130 = vunpack.c.h.b16 %v94
    %v131 = vpack.c.b16 %v117, %v115
    %v132 = vpack.c.b16 %v118, %v116
    %v133 = vpack.c.b16 %v121, %v119
    %v134 = vpack.c.b16 %v122, %v120
    %v135 = vpack.c.b16 %v125, %v123
    %v136 = vpack.c.b16 %v126, %v124
    %v137 = vpack.c.b16 %v129, %v127
    %v138 = vpack.c.b16 %v130, %v128
    %vm147 = vcmask 523264
    %v149 = vsel %vm147, %v86, 0
    %151 = vmatprep.subr.bf16.mxu0 %v132
    %152 = vmatpush1.bf16.msra.mxu0 %v131
    %153 = vmatprep.subr.bf16.mxu0 %v134
    %154 = vmatpush1.bf16.msra.mxu0 %v133
    %155 = vmatprep.subr.bf16.mxu0 %v136
    %156 = vmatpush1.bf16.msra.mxu0 %v135
    %157 = vmatprep.subr.bf16.mxu0 %v138
    %158 = vmatpush1.bf16.msra.mxu0 %v137
    %159 = vmatprep.subr.bf16.mxu0 0
    %160 = vmatpush1.bf16.msra.mxu0 0
    %161 = vmatprep.subr.bf16.mxu0 0
    %162 = vmatpush1.bf16.msra.mxu0 0
    %163 = vmatprep.subr.bf16.mxu0 0
    %164 = vmatpush1.bf16.msra.mxu0 0
    %165 = vmatprep.subr.bf16.mxu0 0
    %166 = vmatpush1.bf16.msra.mxu0 0
    %167 = vmatprep.subr.bf16.mxu0 0
    %168 = vmatpush1.bf16.msra.mxu0 0
    %169 = vmatprep.subr.bf16.mxu0 0
    %170 = vmatpush1.bf16.msra.mxu0 0
    %171 = vmatprep.subr.bf16.mxu0 0
    %172 = vmatpush1.bf16.msra.mxu0 0
    %173 = vmatprep.subr.bf16.mxu0 0
    %174 = vmatpush1.bf16.msra.mxu0 0
    %175 = vmatprep.subr.bf16.mxu0 0
    %176 = vmatpush1.bf16.msra.mxu0 0
    %177 = vmatprep.subr.bf16.mxu0 0
    %178 = vmatpush1.bf16.msra.mxu0 0
    %179 = vmatprep.subr.bf16.mxu0 0
    %180 = vmatpush1.bf16.msra.mxu0 0
    %181 = vmatprep.subr.bf16.mxu0 0
    %182 = vmatpush1.bf16.msra.mxu0 0
    %183 = vmatprep.mubr.bf16.mxu0 0
    %184 = vmatmul.mubr.bf16.gmra.mrb[0].mxu0 %v149
    %v185 = vpop.f32.mrb[0].mxu0
    %v186 = vadd.f32 %v100, %v185
    %v187 = vpop.f32.mrb[0].mxu0
    %v188 = vadd.f32 %v104, %v187
    %v189 = vpop.f32.mrb[0].mxu0
    %v190 = vpop.f32.mrb[0].mxu0
    %191 = vdwg.mxu0
    %v192 = vmax.f32 %v186, 0.0
    %v193 = vmax.f32 %v188, 0.0
    %v194 = vpack.c.bf16 %v192, %v192
    %v195 = vpack.c.bf16 %v193, %v193
    %v196 = vld [vmem:[#allocation4] sm:$0xff]
    %v197 = vld [vmem:[#allocation4 + $0x8] sm:$0xff]
    %v198 = vld [vmem:[#allocation4 + $0x10] sm:$0xff]
    %v199 = vld [vmem:[#allocation4 + $0x18] sm:$0xff]
    %v200 = vld [vmem:[#allocation4 + $0x20] sm:$0xf]
    %v201 = vld [vmem:[#allocation4 + $0x24] sm:$0xff]
    %v202 = vld [vmem:[#allocation4 + $0x2c] sm:$0xff]
    %v203 = vld [vmem:[#allocation4 + $0x34] sm:$0xff]
    %v204 = vld [vmem:[#allocation4 + $0x3c] sm:$0xff]
    %v205 = vld [vmem:[#allocation4 + $0x44] sm:$0xf]
    %v206 = vld [vmem:[#allocation4 + $0x48] sm:$0xff]
    %v207 = vld [vmem:[#allocation4 + $0x50] sm:$0xff]
    %v208 = vld [vmem:[#allocation4 + $0x58] sm:$0xff]
    %v209 = vld [vmem:[#allocation4 + $0x60] sm:$0xff]
    %v210 = vld [vmem:[#allocation4 + $0x68] sm:$0xf]
    %v211 = vld [vmem:[#allocation4 + $0x6c] sm:$0xff]
    %v212 = vld [vmem:[#allocation4 + $0x74] sm:$0xff]
    %v213 = vld [vmem:[#allocation4 + $0x7c] sm:$0xff]
    %v214 = vld [vmem:[#allocation4 + $0x84] sm:$0xff]
    %v215 = vld [vmem:[#allocation4 + $0x8c] sm:$0xf]
    %v216 = vld [vmem:[#allocation4 + $0x90] sm:$0xff]
    %v217 = vld [vmem:[#allocation4 + $0x98] sm:$0xff]
    %v218 = vld [vmem:[#allocation4 + $0xa0] sm:$0xff]
    %v219 = vld [vmem:[#allocation4 + $0xa8] sm:$0xff]
    %v220 = vld [vmem:[#allocation4 + $0xb0] sm:$0xf]
    %v221 = vld [vmem:[#allocation4 + $0xb4] sm:$0xff]
    %v222 = vld [vmem:[#allocation4 + $0xbc] sm:$0xff]
    %v223 = vld [vmem:[#allocation4 + $0xc4] sm:$0xff]
    %v224 = vld [vmem:[#allocation4 + $0xcc] sm:$0xff]
    %v225 = vld [vmem:[#allocation4 + $0xd4] sm:$0xf]
    %v226 = vld [vmem:[#allocation4 + $0xd8] sm:$0xff]
    %v227 = vld [vmem:[#allocation4 + $0xe0] sm:$0xff]
    %v228 = vld [vmem:[#allocation4 + $0xe8] sm:$0xff]
    %v229 = vld [vmem:[#allocation4 + $0xf0] sm:$0xff]
    %v230 = vld [vmem:[#allocation4 + $0xf8] sm:$0xf]
    %v231 = vld [vmem:[#allocation4 + $0xfc] sm:$0xff]
    %v232 = vld [vmem:[#allocation4 + $0x104] sm:$0xff]
    %v233 = vld [vmem:[#allocation4 + $0x10c] sm:$0xff]
    %v234 = vld [vmem:[#allocation4 + $0x114] sm:$0xff]
    %v235 = vld [vmem:[#allocation4 + $0x11c] sm:$0xf]
    %v236 = vld [vmem:[#allocation4 + $0x120] sm:$0xff]
    %v237 = vld [vmem:[#allocation4 + $0x128] sm:$0xff]
    %v238 = vld [vmem:[#allocation4 + $0x130] sm:$0xff]
    %v239 = vld [vmem:[#allocation4 + $0x138] sm:$0xff]
    %v240 = vld [vmem:[#allocation4 + $0x140] sm:$0xf]
    %v241 = vld [vmem:[#allocation4 + $0x144] sm:$0xff]
    %v242 = vld [vmem:[#allocation4 + $0x14c] sm:$0xff]
    %v243 = vld [vmem:[#allocation4 + $0x154] sm:$0xff]
    %v244 = vld [vmem:[#allocation4 + $0x15c] sm:$0xff]
    %v245 = vld [vmem:[#allocation4 + $0x164] sm:$0xf]
    %v246 = vld [vmem:[#allocation4 + $0x168] sm:$0xff]
    %v247 = vld [vmem:[#allocation4 + $0x170] sm:$0xff]
    %v248 = vld [vmem:[#allocation4 + $0x178] sm:$0xff]
    %v249 = vld [vmem:[#allocation4 + $0x180] sm:$0xff]
    %v250 = vld [vmem:[#allocation4 + $0x188] sm:$0xf]
    %v251 = vld [vmem:[#allocation4 + $0x18c] sm:$0xff]
    %v252 = vld [vmem:[#allocation4 + $0x194] sm:$0xff]
    %v253 = vld [vmem:[#allocation4 + $0x19c] sm:$0xff]
    %v254 = vld [vmem:[#allocation4 + $0x1a4] sm:$0xff]
    %v255 = vld [vmem:[#allocation4 + $0x1ac] sm:$0xf]
    %v256 = vld [vmem:[#allocation4 + $0x1b0] sm:$0xff]
    %v257 = vld [vmem:[#allocation4 + $0x1b8] sm:$0xff]
    %v258 = vld [vmem:[#allocation4 + $0x1c0] sm:$0xff]
    %v259 = vld [vmem:[#allocation4 + $0x1c8] sm:$0xff]
    %v260 = vld [vmem:[#allocation4 + $0x1d0] sm:$0xf]
    %v261 = vld [vmem:[#allocation4 + $0x1d4] sm:$0xff]
    %v262 = vld [vmem:[#allocation4 + $0x1dc] sm:$0xff]
    %v263 = vld [vmem:[#allocation4 + $0x1e4] sm:$0xff]
    %v264 = vld [vmem:[#allocation4 + $0x1ec] sm:$0xff]
    %v265 = vld [vmem:[#allocation4 + $0x1f4] sm:$0xf]
    %v266 = vld [vmem:[#allocation4 + $0x1f8] sm:$0xff]
    %v267 = vld [vmem:[#allocation4 + $0x200] sm:$0xff]
    %v268 = vld [vmem:[#allocation4 + $0x208] sm:$0xff]
    %v269 = vld [vmem:[#allocation4 + $0x210] sm:$0xff]
    %v270 = vld [vmem:[#allocation4 + $0x218] sm:$0xf]
    %v271 = vld [vmem:[#allocation4 + $0x21c] sm:$0xff]
    %v272 = vld [vmem:[#allocation4 + $0x224] sm:$0xff]
    %v273 = vld [vmem:[#allocation4 + $0x22c] sm:$0xff]
    %v274 = vld [vmem:[#allocation4 + $0x234] sm:$0xff]
    %v275 = vld [vmem:[#allocation4 + $0x23c] sm:$0xf]
    %v276 = vld [vmem:[#allocation4 + $0x240] sm:$0xff]
    %v277 = vld [vmem:[#allocation4 + $0x248] sm:$0xff]
    %v278 = vld [vmem:[#allocation4 + $0x250] sm:$0xff]
    %v279 = vld [vmem:[#allocation4 + $0x258] sm:$0xff]
    %v280 = vld [vmem:[#allocation4 + $0x260] sm:$0xf]
    %v281 = vld [vmem:[#allocation4 + $0x264] sm:$0xff]
    %v282 = vld [vmem:[#allocation4 + $0x26c] sm:$0xff]
    %v283 = vld [vmem:[#allocation4 + $0x274] sm:$0xff]
    %v284 = vld [vmem:[#allocation4 + $0x27c] sm:$0xff]
    %v285 = vld [vmem:[#allocation4 + $0x284] sm:$0xf]
    %v286 = vld [vmem:[#allocation4 + $0x288] sm:$0xff]
    %v287 = vld [vmem:[#allocation4 + $0x290] sm:$0xff]
    %v288 = vld [vmem:[#allocation4 + $0x298] sm:$0xff]
    %v289 = vld [vmem:[#allocation4 + $0x2a0] sm:$0xff]
    %v290 = vld [vmem:[#allocation4 + $0x2a8] sm:$0xf]
    %v291 = vld [vmem:[#allocation4 + $0x2ac] sm:$0xff]
    %v292 = vld [vmem:[#allocation4 + $0x2b4] sm:$0xff]
    %v293 = vld [vmem:[#allocation4 + $0x2bc] sm:$0xff]
    %v294 = vld [vmem:[#allocation4 + $0x2c4] sm:$0xff]
    %v295 = vld [vmem:[#allocation4 + $0x2cc] sm:$0xf]
    %v296 = vld [vmem:[#allocation4 + $0x2d0] sm:$0xff]
    %v297 = vld [vmem:[#allocation4 + $0x2d8] sm:$0xff]
    %v298 = vld [vmem:[#allocation4 + $0x2e0] sm:$0xff]
    %v299 = vld [vmem:[#allocation4 + $0x2e8] sm:$0xff]
    %v300 = vld [vmem:[#allocation4 + $0x2f0] sm:$0xf]
    %v301 = vld [vmem:[#allocation4 + $0x2f4] sm:$0xff]
    %v302 = vld [vmem:[#allocation4 + $0x2fc] sm:$0xff]
    %v303 = vld [vmem:[#allocation4 + $0x304] sm:$0xff]
    %v304 = vld [vmem:[#allocation4 + $0x30c] sm:$0xff]
    %v305 = vld [vmem:[#allocation4 + $0x314] sm:$0xf]
    %v306 = vld [vmem:[#allocation4 + $0x318] sm:$0xff]
    %v307 = vld [vmem:[#allocation4 + $0x320] sm:$0xff]
    %v308 = vld [vmem:[#allocation4 + $0x328] sm:$0xff]
    %v309 = vld [vmem:[#allocation4 + $0x330] sm:$0xff]
    %v310 = vld [vmem:[#allocation4 + $0x338] sm:$0xf]
    %v311 = vld [vmem:[#allocation4 + $0x33c] sm:$0xff]
    %v312 = vld [vmem:[#allocation4 + $0x344] sm:$0xff]
    %v313 = vld [vmem:[#allocation4 + $0x34c] sm:$0xff]
    %v314 = vld [vmem:[#allocation4 + $0x354] sm:$0xff]
    %v315 = vld [vmem:[#allocation4 + $0x35c] sm:$0xf]
    %v316 = vld [vmem:[#allocation4 + $0x360] sm:$0xff]
    %v317 = vld [vmem:[#allocation4 + $0x368] sm:$0xff]
    %v318 = vld [vmem:[#allocation4 + $0x370] sm:$0xff]
    %v319 = vld [vmem:[#allocation4 + $0x378] sm:$0xff]
    %v320 = vld [vmem:[#allocation4 + $0x380] sm:$0xf]
    %v321 = vld [vmem:[#allocation4 + $0x384] sm:$0xff]
    %v322 = vld [vmem:[#allocation4 + $0x38c] sm:$0xff]
    %v323 = vld [vmem:[#allocation4 + $0x394] sm:$0xff]
    %v324 = vld [vmem:[#allocation4 + $0x39c] sm:$0xff]
    %v325 = vld [vmem:[#allocation4 + $0x3a4] sm:$0xf]
    %v326 = vld [vmem:[#allocation4 + $0x3a8] sm:$0xff]
    %v327 = vld [vmem:[#allocation4 + $0x3b0] sm:$0xff]
    %v328 = vld [vmem:[#allocation4 + $0x3b8] sm:$0xff]
    %v329 = vld [vmem:[#allocation4 + $0x3c0] sm:$0xff]
    %v330 = vld [vmem:[#allocation4 + $0x3c8] sm:$0xf]
    %v331 = vld [vmem:[#allocation4 + $0x3cc] sm:$0xff]
    %v332 = vld [vmem:[#allocation4 + $0x3d4] sm:$0xff]
    %v333 = vld [vmem:[#allocation4 + $0x3dc] sm:$0xff]
    %v334 = vld [vmem:[#allocation4 + $0x3e4] sm:$0xff]
    %v335 = vld [vmem:[#allocation4 + $0x3ec] sm:$0xf]
    %v336 = vld [vmem:[#allocation4 + $0x3f0] sm:$0xff]
    %v337 = vld [vmem:[#allocation4 + $0x3f8] sm:$0xff]
    %v338 = vld [vmem:[#allocation4 + $0x400] sm:$0xff]
    %v339 = vld [vmem:[#allocation4 + $0x408] sm:$0xff]
    %v340 = vld [vmem:[#allocation4 + $0x410] sm:$0xf]
    %v341 = vld [vmem:[#allocation4 + $0x414] sm:$0xff]
    %v342 = vld [vmem:[#allocation4 + $0x41c] sm:$0xff]
    %v343 = vld [vmem:[#allocation4 + $0x424] sm:$0xff]
    %v344 = vld [vmem:[#allocation4 + $0x42c] sm:$0xff]
    %v345 = vld [vmem:[#allocation4 + $0x434] sm:$0xf]
    %v346 = vld [vmem:[#allocation4 + $0x438] sm:$0xff]
    %v347 = vld [vmem:[#allocation4 + $0x440] sm:$0xff]
    %v348 = vld [vmem:[#allocation4 + $0x448] sm:$0xff]
    %v349 = vld [vmem:[#allocation4 + $0x450] sm:$0xff]
    %v350 = vld [vmem:[#allocation4 + $0x458] sm:$0xf]
    %v351 = vld [vmem:[#allocation4 + $0x45c] sm:$0xff]
    %v352 = vld [vmem:[#allocation4 + $0x464] sm:$0xff]
    %v353 = vld [vmem:[#allocation4 + $0x46c] sm:$0xff]
    %v354 = vld [vmem:[#allocation4 + $0x474] sm:$0xff]
    %v355 = vld [vmem:[#allocation4 + $0x47c] sm:$0xf]
    %v356 = vld [vmem:[%s6] sm:$0xff]
    %v357 = vld [vmem:[%s6 + $0x8] sm:$0x1]
    %v360 = vlaneseq
    %v361 = vshrl.u32 %v360, 7
    %v362 = vsub.s32 0, %v361
    %v363 = vrot.slane %v356, %v362
    %v364 = vlaneseq
    %v365 = vshrl.u32 %v364, 7
    %v366 = vsub.s32 1, %v365
    %v367 = vrot.slane %v356, %v366
    %v368 = vlaneseq
    %v369 = vshrl.u32 %v368, 7
    %v370 = vsub.s32 2, %v369
    %v371 = vrot.slane %v356, %v370
    %v372 = vlaneseq
    %v373 = vshrl.u32 %v372, 7
    %v374 = vsub.s32 3, %v373
    %v375 = vrot.slane %v356, %v374
    %v376 = vlaneseq
    %v377 = vshrl.u32 %v376, 7
    %v378 = vsub.s32 4, %v377
    %v379 = vrot.slane %v356, %v378
    %v380 = vlaneseq
    %v381 = vshrl.u32 %v380, 7
    %v382 = vsub.s32 5, %v381
    %v383 = vrot.slane %v356, %v382
    %v384 = vlaneseq
    %v385 = vshrl.u32 %v384, 7
    %v386 = vsub.s32 6, %v385
    %v387 = vrot.slane %v356, %v386
    %v388 = vlaneseq
    %v389 = vshrl.u32 %v388, 7
    %v390 = vsub.s32 7, %v389
    %v391 = vrot.slane %v356, %v390
    %v392 = vlaneseq
    %v393 = vshrl.u32 %v392, 7
    %v394 = vsub.s32 0, %v393
    %v395 = vrot.slane %v357, %v394
    %v565 = vunpack.c.l.b16 %v196
    %v566 = vunpack.c.h.b16 %v196
    %v567 = vunpack.c.l.b16 %v197
    %v568 = vunpack.c.h.b16 %v197
    %v569 = vunpack.c.l.b16 %v198
    %v570 = vunpack.c.h.b16 %v198
    %v571 = vunpack.c.l.b16 %v199
    %v572 = vunpack.c.h.b16 %v199
    %v573 = vunpack.c.l.b16 %v200
    %v574 = vunpack.c.l.b16 %v201
    %v575 = vunpack.c.h.b16 %v201
    %v576 = vunpack.c.l.b16 %v202
    %v577 = vunpack.c.h.b16 %v202
    %v578 = vunpack.c.l.b16 %v203
    %v579 = vunpack.c.h.b16 %v203
    %v580 = vunpack.c.l.b16 %v204
    %v581 = vunpack.c.h.b16 %v204
    %v582 = vunpack.c.l.b16 %v205
    %v583 = vunpack.c.l.b16 %v206
    %v584 = vunpack.c.h.b16 %v206
    %v585 = vunpack.c.l.b16 %v207
    %v586 = vunpack.c.h.b16 %v207
    %v587 = vunpack.c.l.b16 %v208
    %v588 = vunpack.c.h.b16 %v208
    %v589 = vunpack.c.l.b16 %v209
    %v590 = vunpack.c.h.b16 %v209
    %v591 = vunpack.c.l.b16 %v210
    %v592 = vunpack.c.l.b16 %v211
    %v593 = vunpack.c.h.b16 %v211
    %v594 = vunpack.c.l.b16 %v212
    %v595 = vunpack.c.h.b16 %v212
    %v596 = vunpack.c.l.b16 %v213
    %v597 = vunpack.c.h.b16 %v213
    %v598 = vunpack.c.l.b16 %v214
    %v599 = vunpack.c.h.b16 %v214
    %v600 = vunpack.c.l.b16 %v215
    %v601 = vunpack.c.l.b16 %v216
    %v602 = vunpack.c.h.b16 %v216
    %v603 = vunpack.c.l.b16 %v217
    %v604 = vunpack.c.h.b16 %v217
    %v605 = vunpack.c.l.b16 %v218
    %v606 = vunpack.c.h.b16 %v218
    %v607 = vunpack.c.l.b16 %v219
    %v608 = vunpack.c.h.b16 %v219
    %v609 = vunpack.c.l.b16 %v220
    %v610 = vunpack.c.l.b16 %v221
    %v611 = vunpack.c.h.b16 %v221
    %v612 = vunpack.c.l.b16 %v222
    %v613 = vunpack.c.h.b16 %v222
    %v614 = vunpack.c.l.b16 %v223
    %v615 = vunpack.c.h.b16 %v223
    %v616 = vunpack.c.l.b16 %v224
    %v617 = vunpack.c.h.b16 %v224
    %v618 = vunpack.c.l.b16 %v225
    %v619 = vunpack.c.l.b16 %v226
    %v620 = vunpack.c.h.b16 %v226
    %v621 = vunpack.c.l.b16 %v227
    %v622 = vunpack.c.h.b16 %v227
    %v623 = vunpack.c.l.b16 %v228
    %v624 = vunpack.c.h.b16 %v228
    %v625 = vunpack.c.l.b16 %v229
    %v626 = vunpack.c.h.b16 %v229
    %v627 = vunpack.c.l.b16 %v230
    %v628 = vunpack.c.l.b16 %v231
    %v629 = vunpack.c.h.b16 %v231
    %v630 = vunpack.c.l.b16 %v232
    %v631 = vunpack.c.h.b16 %v232
    %v632 = vunpack.c.l.b16 %v233
    %v633 = vunpack.c.h.b16 %v233
    %v634 = vunpack.c.l.b16 %v234
    %v635 = vunpack.c.h.b16 %v234
    %v636 = vunpack.c.l.b16 %v235
    %v637 = vunpack.c.l.b16 %v236
    %v638 = vunpack.c.h.b16 %v236
    %v639 = vunpack.c.l.b16 %v237
    %v640 = vunpack.c.h.b16 %v237
    %v641 = vunpack.c.l.b16 %v238
    %v642 = vunpack.c.h.b16 %v238
    %v643 = vunpack.c.l.b16 %v239
    %v644 = vunpack.c.h.b16 %v239
    %v645 = vunpack.c.l.b16 %v240
    %v646 = vunpack.c.l.b16 %v241
    %v647 = vunpack.c.h.b16 %v241
    %v648 = vunpack.c.l.b16 %v242
    %v649 = vunpack.c.h.b16 %v242
    %v650 = vunpack.c.l.b16 %v243
    %v651 = vunpack.c.h.b16 %v243
    %v652 = vunpack.c.l.b16 %v244
    %v653 = vunpack.c.h.b16 %v244
    %v654 = vunpack.c.l.b16 %v245
    %v655 = vunpack.c.l.b16 %v246
    %v656 = vunpack.c.h.b16 %v246
    %v657 = vunpack.c.l.b16 %v247
    %v658 = vunpack.c.h.b16 %v247
    %v659 = vunpack.c.l.b16 %v248
    %v660 = vunpack.c.h.b16 %v248
    %v661 = vunpack.c.l.b16 %v249
    %v662 = vunpack.c.h.b16 %v249
    %v663 = vunpack.c.l.b16 %v250
    %v664 = vunpack.c.l.b16 %v251
    %v665 = vunpack.c.h.b16 %v251
    %v666 = vunpack.c.l.b16 %v252
    %v667 = vunpack.c.h.b16 %v252
    %v668 = vunpack.c.l.b16 %v253
    %v669 = vunpack.c.h.b16 %v253
    %v670 = vunpack.c.l.b16 %v254
    %v671 = vunpack.c.h.b16 %v254
    %v672 = vunpack.c.l.b16 %v255
    %v673 = vunpack.c.l.b16 %v256
    %v674 = vunpack.c.h.b16 %v256
    %v675 = vunpack.c.l.b16 %v257
    %v676 = vunpack.c.h.b16 %v257
    %v677 = vunpack.c.l.b16 %v258
    %v678 = vunpack.c.h.b16 %v258
    %v679 = vunpack.c.l.b16 %v259
    %v680 = vunpack.c.h.b16 %v259
    %v681 = vunpack.c.l.b16 %v260
    %v682 = vunpack.c.l.b16 %v261
    %v683 = vunpack.c.h.b16 %v261
    %v684 = vunpack.c.l.b16 %v262
    %v685 = vunpack.c.h.b16 %v262
    %v686 = vunpack.c.l.b16 %v263
    %v687 = vunpack.c.h.b16 %v263
    %v688 = vunpack.c.l.b16 %v264
    %v689 = vunpack.c.h.b16 %v264
    %v690 = vunpack.c.l.b16 %v265
    %v691 = vunpack.c.l.b16 %v266
    %v692 = vunpack.c.h.b16 %v266
    %v693 = vunpack.c.l.b16 %v267
    %v694 = vunpack.c.h.b16 %v267
    %v695 = vunpack.c.l.b16 %v268
    %v696 = vunpack.c.h.b16 %v268
    %v697 = vunpack.c.l.b16 %v269
    %v698 = vunpack.c.h.b16 %v269
    %v699 = vunpack.c.l.b16 %v270
    %v700 = vunpack.c.l.b16 %v271
    %v701 = vunpack.c.h.b16 %v271
    %v702 = vunpack.c.l.b16 %v272
    %v703 = vunpack.c.h.b16 %v272
    %v704 = vunpack.c.l.b16 %v273
    %v705 = vunpack.c.h.b16 %v273
    %v706 = vunpack.c.l.b16 %v274
    %v707 = vunpack.c.h.b16 %v274
    %v708 = vunpack.c.l.b16 %v275
    %v709 = vunpack.c.l.b16 %v276
    %v710 = vunpack.c.h.b16 %v276
    %v711 = vunpack.c.l.b16 %v277
    %v712 = vunpack.c.h.b16 %v277
    %v713 = vunpack.c.l.b16 %v278
    %v714 = vunpack.c.h.b16 %v278
    %v715 = vunpack.c.l.b16 %v279
    %v716 = vunpack.c.h.b16 %v279
    %v717 = vunpack.c.l.b16 %v280
    %v718 = vunpack.c.l.b16 %v281
    %v719 = vunpack.c.h.b16 %v281
    %v720 = vunpack.c.l.b16 %v282
    %v721 = vunpack.c.h.b16 %v282
    %v722 = vunpack.c.l.b16 %v283
    %v723 = vunpack.c.h.b16 %v283
    %v724 = vunpack.c.l.b16 %v284
    %v725 = vunpack.c.h.b16 %v284
    %v726 = vunpack.c.l.b16 %v285
    %v727 = vunpack.c.l.b16 %v286
    %v728 = vunpack.c.h.b16 %v286
    %v729 = vunpack.c.l.b16 %v287
    %v730 = vunpack.c.h.b16 %v287
    %v731 = vunpack.c.l.b16 %v288
    %v732 = vunpack.c.h.b16 %v288
    %v733 = vunpack.c.l.b16 %v289
    %v734 = vunpack.c.h.b16 %v289
    %v735 = vunpack.c.l.b16 %v290
    %v736 = vunpack.c.l.b16 %v291
    %v737 = vunpack.c.h.b16 %v291
    %v738 = vunpack.c.l.b16 %v292
    %v739 = vunpack.c.h.b16 %v292
    %v740 = vunpack.c.l.b16 %v293
    %v741 = vunpack.c.h.b16 %v293
    %v742 = vunpack.c.l.b16 %v294
    %v743 = vunpack.c.h.b16 %v294
    %v744 = vunpack.c.l.b16 %v295
    %v745 = vunpack.c.l.b16 %v296
    %v746 = vunpack.c.h.b16 %v296
    %v747 = vunpack.c.l.b16 %v297
    %v748 = vunpack.c.h.b16 %v297
    %v749 = vunpack.c.l.b16 %v298
    %v750 = vunpack.c.h.b16 %v298
    %v751 = vunpack.c.l.b16 %v299
    %v752 = vunpack.c.h.b16 %v299
    %v753 = vunpack.c.l.b16 %v300
    %v754 = vunpack.c.l.b16 %v301
    %v755 = vunpack.c.h.b16 %v301
    %v756 = vunpack.c.l.b16 %v302
    %v757 = vunpack.c.h.b16 %v302
    %v758 = vunpack.c.l.b16 %v303
    %v759 = vunpack.c.h.b16 %v303
    %v760 = vunpack.c.l.b16 %v304
    %v761 = vunpack.c.h.b16 %v304
    %v762 = vunpack.c.l.b16 %v305
    %v763 = vunpack.c.l.b16 %v306
    %v764 = vunpack.c.h.b16 %v306
    %v765 = vunpack.c.l.b16 %v307
    %v766 = vunpack.c.h.b16 %v307
    %v767 = vunpack.c.l.b16 %v308
    %v768 = vunpack.c.h.b16 %v308
    %v769 = vunpack.c.l.b16 %v309
    %v770 = vunpack.c.h.b16 %v309
    %v771 = vunpack.c.l.b16 %v310
    %v772 = vunpack.c.l.b16 %v311
    %v773 = vunpack.c.h.b16 %v311
    %v774 = vunpack.c.l.b16 %v312
    %v775 = vunpack.c.h.b16 %v312
    %v776 = vunpack.c.l.b16 %v313
    %v777 = vunpack.c.h.b16 %v313
    %v778 = vunpack.c.l.b16 %v314
    %v779 = vunpack.c.h.b16 %v314
    %v780 = vunpack.c.l.b16 %v315
    %v781 = vunpack.c.l.b16 %v316
    %v782 = vunpack.c.h.b16 %v316
    %v783 = vunpack.c.l.b16 %v317
    %v784 = vunpack.c.h.b16 %v317
    %v785 = vunpack.c.l.b16 %v318
    %v786 = vunpack.c.h.b16 %v318
    %v787 = vunpack.c.l.b16 %v319
    %v788 = vunpack.c.h.b16 %v319
    %v789 = vunpack.c.l.b16 %v320
    %v790 = vunpack.c.l.b16 %v321
    %v791 = vunpack.c.h.b16 %v321
    %v792 = vunpack.c.l.b16 %v322
    %v793 = vunpack.c.h.b16 %v322
    %v794 = vunpack.c.l.b16 %v323
    %v795 = vunpack.c.h.b16 %v323
    %v796 = vunpack.c.l.b16 %v324
    %v797 = vunpack.c.h.b16 %v324
    %v798 = vunpack.c.l.b16 %v325
    %v799 = vunpack.c.l.b16 %v326
    %v800 = vunpack.c.h.b16 %v326
    %v801 = vunpack.c.l.b16 %v327
    %v802 = vunpack.c.h.b16 %v327
    %v803 = vunpack.c.l.b16 %v328
    %v804 = vunpack.c.h.b16 %v328
    %v805 = vunpack.c.l.b16 %v329
    %v806 = vunpack.c.h.b16 %v329
    %v807 = vunpack.c.l.b16 %v330
    %v808 = vunpack.c.l.b16 %v331
    %v809 = vunpack.c.h.b16 %v331
    %v810 = vunpack.c.l.b16 %v332
    %v811 = vunpack.c.h.b16 %v332
    %v812 = vunpack.c.l.b16 %v333
    %v813 = vunpack.c.h.b16 %v333
    %v814 = vunpack.c.l.b16 %v334
    %v815 = vunpack.c.h.b16 %v334
    %v816 = vunpack.c.l.b16 %v335
    %v817 = vunpack.c.l.b16 %v336
    %v818 = vunpack.c.h.b16 %v336
    %v819 = vunpack.c.l.b16 %v337
    %v820 = vunpack.c.h.b16 %v337
    %v821 = vunpack.c.l.b16 %v338
    %v822 = vunpack.c.h.b16 %v338
    %v823 = vunpack.c.l.b16 %v339
    %v824 = vunpack.c.h.b16 %v339
    %v825 = vunpack.c.l.b16 %v340
    %v826 = vunpack.c.l.b16 %v341
    %v827 = vunpack.c.h.b16 %v341
    %v828 = vunpack.c.l.b16 %v342
    %v829 = vunpack.c.h.b16 %v342
    %v830 = vunpack.c.l.b16 %v343
    %v831 = vunpack.c.h.b16 %v343
    %v832 = vunpack.c.l.b16 %v344
    %v833 = vunpack.c.h.b16 %v344
    %v834 = vunpack.c.l.b16 %v345
    %v835 = vunpack.c.l.b16 %v346
    %v836 = vunpack.c.h.b16 %v346
    %v837 = vunpack.c.l.b16 %v347
    %v838 = vunpack.c.h.b16 %v347
    %v839 = vunpack.c.l.b16 %v348
    %v840 = vunpack.c.h.b16 %v348
    %v841 = vunpack.c.l.b16 %v349
    %v842 = vunpack.c.h.b16 %v349
    %v843 = vunpack.c.l.b16 %v350
    %v844 = vunpack.c.l.b16 %v351
    %v845 = vunpack.c.h.b16 %v351
    %v846 = vunpack.c.l.b16 %v352
    %v847 = vunpack.c.h.b16 %v352
    %v848 = vunpack.c.l.b16 %v353
    %v849 = vunpack.c.h.b16 %v353
    %v850 = vunpack.c.l.b16 %v354
    %v851 = vunpack.c.h.b16 %v354
    %v852 = vunpack.c.l.b16 %v355
    %v853 = vpack.c.b16 %v574, %v565
    %v854 = vpack.c.b16 %v575, %v566
    %v855 = vpack.c.b16 %v576, %v567
    %v856 = vpack.c.b16 %v577, %v568
    %v857 = vpack.c.b16 %v578, %v569
    %v858 = vpack.c.b16 %v579, %v570
    %v859 = vpack.c.b16 %v580, %v571
    %v860 = vpack.c.b16 %v581, %v572
    %v861 = vpack.c.b16 %v582, %v573
    %v862 = vpack.c.b16 %v592, %v583
    %v863 = vpack.c.b16 %v593, %v584
    %v864 = vpack.c.b16 %v594, %v585
    %v865 = vpack.c.b16 %v595, %v586
    %v866 = vpack.c.b16 %v596, %v587
    %v867 = vpack.c.b16 %v597, %v588
    %v868 = vpack.c.b16 %v598, %v589
    %v869 = vpack.c.b16 %v599, %v590
    %v870 = vpack.c.b16 %v600, %v591
    %v871 = vpack.c.b16 %v610, %v601
    %v872 = vpack.c.b16 %v611, %v602
    %v873 = vpack.c.b16 %v612, %v603
    %v874 = vpack.c.b16 %v613, %v604
    %v875 = vpack.c.b16 %v614, %v605
    %v876 = vpack.c.b16 %v615, %v606
    %v877 = vpack.c.b16 %v616, %v607
    %v878 = vpack.c.b16 %v617, %v608
    %v879 = vpack.c.b16 %v618, %v609
    %v880 = vpack.c.b16 %v628, %v619
    %v881 = vpack.c.b16 %v629, %v620
    %v882 = vpack.c.b16 %v630, %v621
    %v883 = vpack.c.b16 %v631, %v622
    %v884 = vpack.c.b16 %v632, %v623
    %v885 = vpack.c.b16 %v633, %v624
    %v886 = vpack.c.b16 %v634, %v625
    %v887 = vpack.c.b16 %v635, %v626
    %v888 = vpack.c.b16 %v636, %v627
    %v889 = vpack.c.b16 %v646, %v637
    %v890 = vpack.c.b16 %v647, %v638
    %v891 = vpack.c.b16 %v648, %v639
    %v892 = vpack.c.b16 %v649, %v640
    %v893 = vpack.c.b16 %v650, %v641
    %v894 = vpack.c.b16 %v651, %v642
    %v895 = vpack.c.b16 %v652, %v643
    %v896 = vpack.c.b16 %v653, %v644
    %v897 = vpack.c.b16 %v654, %v645
    %v898 = vpack.c.b16 %v664, %v655
    %v899 = vpack.c.b16 %v665, %v656
    %v900 = vpack.c.b16 %v666, %v657
    %v901 = vpack.c.b16 %v667, %v658
    %v902 = vpack.c.b16 %v668, %v659
    %v903 = vpack.c.b16 %v669, %v660
    %v904 = vpack.c.b16 %v670, %v661
    %v905 = vpack.c.b16 %v671, %v662
    %v906 = vpack.c.b16 %v672, %v663
    %v907 = vpack.c.b16 %v682, %v673
    %v908 = vpack.c.b16 %v683, %v674
    %v909 = vpack.c.b16 %v684, %v675
    %v910 = vpack.c.b16 %v685, %v676
    %v911 = vpack.c.b16 %v686, %v677
    %v912 = vpack.c.b16 %v687, %v678
    %v913 = vpack.c.b16 %v688, %v679
    %v914 = vpack.c.b16 %v689, %v680
    %v915 = vpack.c.b16 %v690, %v681
    %v916 = vpack.c.b16 %v700, %v691
    %v917 = vpack.c.b16 %v701, %v692
    %v918 = vpack.c.b16 %v702, %v693
    %v919 = vpack.c.b16 %v703, %v694
    %v920 = vpack.c.b16 %v704, %v695
    %v921 = vpack.c.b16 %v705, %v696
    %v922 = vpack.c.b16 %v706, %v697
    %v923 = vpack.c.b16 %v707, %v698
    %v924 = vpack.c.b16 %v708, %v699
    %v925 = vpack.c.b16 %v718, %v709
    %v926 = vpack.c.b16 %v719, %v710
    %v927 = vpack.c.b16 %v720, %v711
    %v928 = vpack.c.b16 %v721, %v712
    %v929 = vpack.c.b16 %v722, %v713
    %v930 = vpack.c.b16 %v723, %v714
    %v931 = vpack.c.b16 %v724, %v715
    %v932 = vpack.c.b16 %v725, %v716
    %v933 = vpack.c.b16 %v726, %v717
    %v934 = vpack.c.b16 %v736, %v727
    %v935 = vpack.c.b16 %v737, %v728
    %v936 = vpack.c.b16 %v738, %v729
    %v937 = vpack.c.b16 %v739, %v730
    %v938 = vpack.c.b16 %v740, %v731
    %v939 = vpack.c.b16 %v741, %v732
    %v940 = vpack.c.b16 %v742, %v733
    %v941 = vpack.c.b16 %v743, %v734
    %v942 = vpack.c.b16 %v744, %v735
    %v943 = vpack.c.b16 %v754, %v745
    %v944 = vpack.c.b16 %v755, %v746
    %v945 = vpack.c.b16 %v756, %v747
    %v946 = vpack.c.b16 %v757, %v748
    %v947 = vpack.c.b16 %v758, %v749
    %v948 = vpack.c.b16 %v759, %v750
    %v949 = vpack.c.b16 %v760, %v751
    %v950 = vpack.c.b16 %v761, %v752
    %v951 = vpack.c.b16 %v762, %v753
    %v952 = vpack.c.b16 %v772, %v763
    %v953 = vpack.c.b16 %v773, %v764
    %v954 = vpack.c.b16 %v774, %v765
    %v955 = vpack.c.b16 %v775, %v766
    %v956 = vpack.c.b16 %v776, %v767
    %v957 = vpack.c.b16 %v777, %v768
    %v958 = vpack.c.b16 %v778, %v769
    %v959 = vpack.c.b16 %v779, %v770
    %v960 = vpack.c.b16 %v780, %v771
    %v961 = vpack.c.b16 %v790, %v781
    %v962 = vpack.c.b16 %v791, %v782
    %v963 = vpack.c.b16 %v792, %v783
    %v964 = vpack.c.b16 %v793, %v784
    %v965 = vpack.c.b16 %v794, %v785
    %v966 = vpack.c.b16 %v795, %v786
    %v967 = vpack.c.b16 %v796, %v787
    %v968 = vpack.c.b16 %v797, %v788
    %v969 = vpack.c.b16 %v798, %v789
    %v970 = vpack.c.b16 %v808, %v799
    %v971 = vpack.c.b16 %v809, %v800
    %v972 = vpack.c.b16 %v810, %v801
    %v973 = vpack.c.b16 %v811, %v802
    %v974 = vpack.c.b16 %v812, %v803
    %v975 = vpack.c.b16 %v813, %v804
    %v976 = vpack.c.b16 %v814, %v805
    %v977 = vpack.c.b16 %v815, %v806
    %v978 = vpack.c.b16 %v816, %v807
    %v979 = vpack.c.b16 %v826, %v817
    %v980 = vpack.c.b16 %v827, %v818
    %v981 = vpack.c.b16 %v828, %v819
    %v982 = vpack.c.b16 %v829, %v820
    %v983 = vpack.c.b16 %v830, %v821
    %v984 = vpack.c.b16 %v831, %v822
    %v985 = vpack.c.b16 %v832, %v823
    %v986 = vpack.c.b16 %v833, %v824
    %v987 = vpack.c.b16 %v834, %v825
    %v988 = vpack.c.b16 %v844, %v835
    %v989 = vpack.c.b16 %v845, %v836
    %v990 = vpack.c.b16 %v846, %v837
    %v991 = vpack.c.b16 %v847, %v838
    %v992 = vpack.c.b16 %v848, %v839
    %v993 = vpack.c.b16 %v849, %v840
    %v994 = vpack.c.b16 %v850, %v841
    %v995 = vpack.c.b16 %v851, %v842
    %v996 = vpack.c.b16 %v852, %v843
    %1141 = vmatprep.subr.bf16.mxu0 %v854
    %1142 = vmatpush1.bf16.msra.mxu0 %v853
    %1143 = vmatprep.subr.bf16.mxu0 %v863
    %1144 = vmatpush1.bf16.msra.mxu0 %v862
    %1145 = vmatprep.subr.bf16.mxu0 %v872
    %1146 = vmatpush1.bf16.msra.mxu0 %v871
    %1147 = vmatprep.subr.bf16.mxu0 %v881
    %1148 = vmatpush1.bf16.msra.mxu0 %v880
    %1149 = vmatprep.subr.bf16.mxu0 %v890
    %1150 = vmatpush1.bf16.msra.mxu0 %v889
    %1151 = vmatprep.subr.bf16.mxu0 %v899
    %1152 = vmatpush1.bf16.msra.mxu0 %v898
    %1153 = vmatprep.subr.bf16.mxu0 %v908
    %1154 = vmatpush1.bf16.msra.mxu0 %v907
    %1155 = vmatprep.subr.bf16.mxu0 %v917
    %1156 = vmatpush1.bf16.msra.mxu0 %v916
    %1157 = vmatprep.subr.bf16.mxu0 %v926
    %1158 = vmatpush1.bf16.msra.mxu0 %v925
    %1159 = vmatprep.subr.bf16.mxu0 %v935
    %1160 = vmatpush1.bf16.msra.mxu0 %v934
    %1161 = vmatprep.subr.bf16.mxu0 %v944
    %1162 = vmatpush1.bf16.msra.mxu0 %v943
    %1163 = vmatprep.subr.bf16.mxu0 %v953
    %1164 = vmatpush1.bf16.msra.mxu0 %v952
    %1165 = vmatprep.subr.bf16.mxu0 %v962
    %1166 = vmatpush1.bf16.msra.mxu0 %v961
    %1167 = vmatprep.subr.bf16.mxu0 %v971
    %1168 = vmatpush1.bf16.msra.mxu0 %v970
    %1169 = vmatprep.subr.bf16.mxu0 %v980
    %1170 = vmatpush1.bf16.msra.mxu0 %v979
    %1171 = vmatprep.subr.bf16.mxu0 %v989
    %1172 = vmatpush1.bf16.msra.mxu0 %v988
    %1173 = vmatprep.mubr.bf16.mxu0 %v195
    %1174 = vmatmul.mubr.bf16.gmra.mrb[0].mxu0 %v194
    %v1175 = vpop.f32.mrb[0].mxu0
    %v1176 = vadd.f32 %v363, %v1175
    %v1177 = vpop.f32.mrb[0].mxu0
    %v1178 = vadd.f32 %v367, %v1177
    %v1179 = vpop.f32.mrb[0].mxu0
    %v1180 = vpop.f32.mrb[0].mxu0
    %1181 = vdwg.mxu0
    %1182 = vmatprep.subr.bf16.mxu0 %v856
    %1183 = vmatpush1.bf16.msra.mxu0 %v855
    %1184 = vmatprep.subr.bf16.mxu0 %v865
    %1185 = vmatpush1.bf16.msra.mxu0 %v864
    %1186 = vmatprep.subr.bf16.mxu0 %v874
    %1187 = vmatpush1.bf16.msra.mxu0 %v873
    %1188 = vmatprep.subr.bf16.mxu0 %v883
    %1189 = vmatpush1.bf16.msra.mxu0 %v882
    %1190 = vmatprep.subr.bf16.mxu0 %v892
    %1191 = vmatpush1.bf16.msra.mxu0 %v891
    %1192 = vmatprep.subr.bf16.mxu0 %v901
    %1193 = vmatpush1.bf16.msra.mxu0 %v900
    %1194 = vmatprep.subr.bf16.mxu0 %v910
    %1195 = vmatpush1.bf16.msra.mxu0 %v909
    %1196 = vmatprep.subr.bf16.mxu0 %v919
    %1197 = vmatpush1.bf16.msra.mxu0 %v918
    %1198 = vmatprep.subr.bf16.mxu0 %v928
    %1199 = vmatpush1.bf16.msra.mxu0 %v927
    %1200 = vmatprep.subr.bf16.mxu0 %v937
    %1201 = vmatpush1.bf16.msra.mxu0 %v936
    %1202 = vmatprep.subr.bf16.mxu0 %v946
    %1203 = vmatpush1.bf16.msra.mxu0 %v945
    %1204 = vmatprep.subr.bf16.mxu0 %v955
    %1205 = vmatpush1.bf16.msra.mxu0 %v954
    %1206 = vmatprep.subr.bf16.mxu0 %v964
    %1207 = vmatpush1.bf16.msra.mxu0 %v963
    %1208 = vmatprep.subr.bf16.mxu0 %v973
    %1209 = vmatpush1.bf16.msra.mxu0 %v972
    %1210 = vmatprep.subr.bf16.mxu0 %v982
    %1211 = vmatpush1.bf16.msra.mxu0 %v981
    %1212 = vmatprep.subr.bf16.mxu0 %v991
    %1213 = vmatpush1.bf16.msra.mxu0 %v990
    %1214 = vmatprep.mubr.bf16.mxu0 %v195
    %1215 = vmatmul.mubr.bf16.gmra.mrb[0].mxu0 %v194
    %v1216 = vpop.f32.mrb[0].mxu0
    %v1217 = vadd.f32 %v371, %v1216
    %v1218 = vpop.f32.mrb[0].mxu0
    %v1219 = vadd.f32 %v375, %v1218
    %v1220 = vpop.f32.mrb[0].mxu0
    %v1221 = vpop.f32.mrb[0].mxu0
    %1222 = vdwg.mxu0
    %1223 = vmatprep.subr.bf16.mxu0 %v858
    %1224 = vmatpush1.bf16.msra.mxu0 %v857
    %1225 = vmatprep.subr.bf16.mxu0 %v867
    %1226 = vmatpush1.bf16.msra.mxu0 %v866
    %1227 = vmatprep.subr.bf16.mxu0 %v876
    %1228 = vmatpush1.bf16.msra.mxu0 %v875
    %1229 = vmatprep.subr.bf16.mxu0 %v885
    %1230 = vmatpush1.bf16.msra.mxu0 %v884
    %1231 = vmatprep.subr.bf16.mxu0 %v894
    %1232 = vmatpush1.bf16.msra.mxu0 %v893
    %1233 = vmatprep.subr.bf16.mxu0 %v903
    %1234 = vmatpush1.bf16.msra.mxu0 %v902
    %1235 = vmatprep.subr.bf16.mxu0 %v912
    %1236 = vmatpush1.bf16.msra.mxu0 %v911
    %1237 = vmatprep.subr.bf16.mxu0 %v921
    %1238 = vmatpush1.bf16.msra.mxu0 %v920
    %1239 = vmatprep.subr.bf16.mxu0 %v930
    %1240 = vmatpush1.bf16.msra.mxu0 %v929
    %1241 = vmatprep.subr.bf16.mxu0 %v939
    %1242 = vmatpush1.bf16.msra.mxu0 %v938
    %1243 = vmatprep.subr.bf16.mxu0 %v948
    %1244 = vmatpush1.bf16.msra.mxu0 %v947
    %1245 = vmatprep.subr.bf16.mxu0 %v957
    %1246 = vmatpush1.bf16.msra.mxu0 %v956
    %1247 = vmatprep.subr.bf16.mxu0 %v966
    %1248 = vmatpush1.bf16.msra.mxu0 %v965
    %1249 = vmatprep.subr.bf16.mxu0 %v975
    %1250 = vmatpush1.bf16.msra.mxu0 %v974
    %1251 = vmatprep.subr.bf16.mxu0 %v984
    %1252 = vmatpush1.bf16.msra.mxu0 %v983
    %1253 = vmatprep.subr.bf16.mxu0 %v993
    %1254 = vmatpush1.bf16.msra.mxu0 %v992
    %1255 = vmatprep.mubr.bf16.mxu0 %v195
    %1256 = vmatmul.mubr.bf16.gmra.mrb[0].mxu0 %v194
    %v1257 = vpop.f32.mrb[0].mxu0
    %v1258 = vadd.f32 %v379, %v1257
    %v1259 = vpop.f32.mrb[0].mxu0
    %v1260 = vadd.f32 %v383, %v1259
    %v1261 = vpop.f32.mrb[0].mxu0
    %v1262 = vpop.f32.mrb[0].mxu0
    %1263 = vdwg.mxu0
    %1264 = vmatprep.subr.bf16.mxu0 %v860
    %1265 = vmatpush1.bf16.msra.mxu0 %v859
    %1266 = vmatprep.subr.bf16.mxu0 %v869
    %1267 = vmatpush1.bf16.msra.mxu0 %v868
    %1268 = vmatprep.subr.bf16.mxu0 %v878
    %1269 = vmatpush1.bf16.msra.mxu0 %v877
    %1270 = vmatprep.subr.bf16.mxu0 %v887
    %1271 = vmatpush1.bf16.msra.mxu0 %v886
    %1272 = vmatprep.subr.bf16.mxu0 %v896
    %1273 = vmatpush1.bf16.msra.mxu0 %v895
    %1274 = vmatprep.subr.bf16.mxu0 %v905
    %1275 = vmatpush1.bf16.msra.mxu0 %v904
    %1276 = vmatprep.subr.bf16.mxu0 %v914
    %1277 = vmatpush1.bf16.msra.mxu0 %v913
    %1278 = vmatprep.subr.bf16.mxu0 %v923
    %1279 = vmatpush1.bf16.msra.mxu0 %v922
    %1280 = vmatprep.subr.bf16.mxu0 %v932
    %1281 = vmatpush1.bf16.msra.mxu0 %v931
    %1282 = vmatprep.subr.bf16.mxu0 %v941
    %1283 = vmatpush1.bf16.msra.mxu0 %v940
    %1284 = vmatprep.subr.bf16.mxu0 %v950
    %1285 = vmatpush1.bf16.msra.mxu0 %v949
    %1286 = vmatprep.subr.bf16.mxu0 %v959
    %1287 = vmatpush1.bf16.msra.mxu0 %v958
    %1288 = vmatprep.subr.bf16.mxu0 %v968
    %1289 = vmatpush1.bf16.msra.mxu0 %v967
    %1290 = vmatprep.subr.bf16.mxu0 %v977
    %1291 = vmatpush1.bf16.msra.mxu0 %v976
    %1292 = vmatprep.subr.bf16.mxu0 %v986
    %1293 = vmatpush1.bf16.msra.mxu0 %v985
    %1294 = vmatprep.subr.bf16.mxu0 %v995
    %1295 = vmatpush1.bf16.msra.mxu0 %v994
    %1296 = vmatprep.mubr.bf16.mxu0 %v195
    %1297 = vmatmul.mubr.bf16.gmra.mrb[0].mxu0 %v194
    %v1298 = vpop.f32.mrb[0].mxu0
    %v1299 = vadd.f32 %v387, %v1298
    %v1300 = vpop.f32.mrb[0].mxu0
    %v1301 = vadd.f32 %v391, %v1300
    %v1302 = vpop.f32.mrb[0].mxu0
    %v1303 = vpop.f32.mrb[0].mxu0
    %1304 = vdwg.mxu0
    %1305 = vmatprep.subr.bf16.mxu0 0
    %1306 = vmatpush1.bf16.msra.mxu0 %v861
    %1307 = vmatprep.subr.bf16.mxu0 0
    %1308 = vmatpush1.bf16.msra.mxu0 %v870
    %1309 = vmatprep.subr.bf16.mxu0 0
    %1310 = vmatpush1.bf16.msra.mxu0 %v879
    %1311 = vmatprep.subr.bf16.mxu0 0
    %1312 = vmatpush1.bf16.msra.mxu0 %v888
    %1313 = vmatprep.subr.bf16.mxu0 0
    %1314 = vmatpush1.bf16.msra.mxu0 %v897
    %1315 = vmatprep.subr.bf16.mxu0 0
    %1316 = vmatpush1.bf16.msra.mxu0 %v906
    %1317 = vmatprep.subr.bf16.mxu0 0
    %1318 = vmatpush1.bf16.msra.mxu0 %v915
    %1319 = vmatprep.subr.bf16.mxu0 0
    %1320 = vmatpush1.bf16.msra.mxu0 %v924
    %1321 = vmatprep.subr.bf16.mxu0 0
    %1322 = vmatpush1.bf16.msra.mxu0 %v933
    %1323 = vmatprep.subr.bf16.mxu0 0
    %1324 = vmatpush1.bf16.msra.mxu0 %v942
    %1325 = vmatprep.subr.bf16.mxu0 0
    %1326 = vmatpush1.bf16.msra.mxu0 %v951
    %1327 = vmatprep.subr.bf16.mxu0 0
    %1328 = vmatpush1.bf16.msra.mxu0 %v960
    %1329 = vmatprep.subr.bf16.mxu0 0
    %1330 = vmatpush1.bf16.msra.mxu0 %v969
    %1331 = vmatprep.subr.bf16.mxu0 0
    %1332 = vmatpush1.bf16.msra.mxu0 %v978
    %1333 = vmatprep.subr.bf16.mxu0 0
    %1334 = vmatpush1.bf16.msra.mxu0 %v987
    %1335 = vmatprep.subr.bf16.mxu0 0
    %1336 = vmatpush1.bf16.msra.mxu0 %v996
    %1337 = vmatprep.mubr.bf16.mxu0 %v195
    %1338 = vmatmul.mubr.bf16.gmra.mrb[0].mxu0 %v194
    %v1339 = vpop.f32.mrb[0].mxu0
    %v1340 = vadd.f32 %v395, %v1339
    %v1341 = vpop.f32.mrb[0].mxu0
    %v1342 = vpop.f32.mrb[0].mxu0
    %v1343 = vpop.f32.mrb[0].mxu0
    %1344 = vdwg.mxu0
    %1345 = vst [vmem:[%s7] sm:$0xff] %v1176
    %1346 = vst [vmem:[%s7 + $0x8] sm:$0xff] %v1178
    %1347 = vst [vmem:[%s7 + $0x10] sm:$0xff] %v1217
    %1348 = vst [vmem:[%s7 + $0x18] sm:$0xff] %v1219
    %1349 = vst [vmem:[%s7 + $0x20] sm:$0xff] %v1258
    %1350 = vst [vmem:[%s7 + $0x28] sm:$0xff] %v1260
    %1351 = vst [vmem:[%s7 + $0x30] sm:$0xff] %v1299
    %1352 = vst [vmem:[%s7 + $0x38] sm:$0xff] %v1301
    %1353 = vst [vmem:[%s7 + $0x40] sm:$0xff] %v1340
    // Predicated region
    $region38: #{neural_translator_forward.1} parent=1 // pred_check
      _
    $region39: #{neural_translator_forward.1} parent=1 // pred_check_branch
      %1355 = sbr.rel (0) target = $region41
    $region40: #{neural_translator_forward.1} parent=1 // pred_region
      _
    $region41: #{neural_translator_forward.1} parent=1 // pred_fallthru
      _
    // Predicated region
    $region42: #{neural_translator_forward.1} parent=1 // pred_check
      _
    $region43: #{neural_translator_forward.1} parent=1 // pred_check_branch
      %1357 = sbr.rel (0) target = $region45
    $region44: #{neural_translator_forward.1} parent=1 // pred_region
      _
    $region45: #{neural_translator_forward.1} parent=1 // pred_fallthru
      _
    %1358 = vsyncpa [#allocation3], 1
    %1359 = vsyncpa [#allocation5], 1

</llo_original>
